<compile_context>
chip_gen: v7x
topology: tpu7x:2x2x1
jax: 0.10.0
libtpu: 0.0.40
codegen_flags: <defaults>
</compile_context>

<pallas_src>
import functools

import numpy as np
import jax
import jax.numpy as jnp
from jax.experimental import pallas as pl
from jax.experimental.pallas import tpu as pltpu


def embed_concat_kernel(gt_ref, ctx_ref, embt_ref, sample_ref,
                        *, num_classes, emb_dim):
    """One grid step: one batch element x one tile of TP pixels.

    gt_ref     : [1, TP]        int32    class index per pixel (may be ignore_index)
    ctx_ref    : [Cc, TP]       float32  contextual features (channels-major)
    embt_ref   : [E, C_cls]     float32  transposed embedding table (full)
    sample_ref : [E+Cc, TP]     float32  out: rows [0:E]  = embedding(gt)
                                              rows [E: ]  = contextual
    """
    gt = gt_ref[...]                                               # [1, TP]

    # one-hot along the class (sublane) axis; ignore_index -> all-zero column,
    # matching jax.nn.one_hot semantics (embedding row of zeros).
    cls_iota = jax.lax.broadcasted_iota(
        jnp.int32, (num_classes, gt.shape[-1]), 0)                 # [C, TP]
    onehot = (cls_iota == gt).astype(jnp.float32)                  # [C, TP]

    # condition[E, TP] = emb.T[E, C] @ onehot[C, TP]  (MXU, f32 accumulate)
    cond = jnp.dot(embt_ref[...], onehot,
                   preferred_element_type=jnp.float32)             # [E, TP]

    # channel concat == two direct slice stores (no concatenate intermediate).
    sample_ref[:emb_dim, :] = cond.astype(sample_ref.dtype)
    sample_ref[emb_dim:, :] = ctx_ref[...].astype(sample_ref.dtype)


def _choose_pixel_tile(hw, e, cc):
    """Lane-axis (pixel) tile: big, multiple of 128, sized against VMEM budget."""
    # bytes touched per pixel per step: gt (sublane-padded to 8 rows) + ctx in
    # + sample out, all f32/int32.
    per_pixel_bytes = 4 * (8 + cc + (e + cc))
    budget = 12 * 1024 * 1024        # per buffer set; x2 double-buffered ~ 24 MiB
    tp = budget // max(per_pixel_bytes, 1)
    tp = max(128, min(2048, (tp // 128) * 128))   # cap keeps v7x (64 MiB VMEM) safe
    # a full-extent last-dim block is always legal, even if hw % 128 != 0
    return hw if hw <= tp else tp


def ours_sample(gt, emb_vis, contextual, *, ignore_index):
    """Builds `self.sample`, `self.ignore_mask` and the valid-pixel count.

    gt         : [B, H, W]      int32
    emb_vis    : [C_cls, E]     float32   (nn.Embedding.from_pretrained weight)
    contextual : [B, Cc, H, W]  float32   (NCHW, like the PyTorch backbone output)

    Returns (sample [B, E+Cc, H, W] NCHW, ignore_mask [B, H, W] bool, count int32)
    """
    B, H, W = gt.shape
    C_cls, E = emb_vis.shape
    _, Cc, Hc, Wc = contextual.shape
    assert (Hc, Wc) == (H, W), "example feeds gt already at the target resolution"
    HW = H * W

    TP = _choose_pixel_tile(HW, E, Cc)
    grid = (B, pl.cdiv(HW, TP))

    # Free reshapes only (contiguous NCHW); the only transpose is the tiny table.
    gt3 = gt.reshape(B, 1, HW).astype(jnp.int32)
    ctx3 = contextual.reshape(B, Cc, HW)
    emb_t = jnp.transpose(emb_vis)                     # [E, C_cls], negligible

    kernel = functools.partial(embed_concat_kernel,
                               num_classes=C_cls, emb_dim=E)

    sample_flat = pl.pallas_call(
        kernel,
        out_shape=jax.ShapeDtypeStruct((B, E + Cc, HW), jnp.float32),
        grid_spec=pltpu.PrefetchScalarGridSpec(
            num_scalar_prefetch=0,
            grid=grid,
            in_specs=[
                pl.BlockSpec((None, 1, TP), lambda b, j: (b, 0, j)),     # gt rows
                pl.BlockSpec((None, Cc, TP), lambda b, j: (b, 0, j)),    # contextual
                pl.BlockSpec((E, C_cls), lambda b, j: (0, 0)),           # emb table
            ],
            out_specs=pl.BlockSpec((None, E + Cc, TP), lambda b, j: (b, 0, j)),
        ),
        compiler_params=pltpu.CompilerParams(
            # no cross-step accumulator anymore -> both axes fully parallel
            # (lets v7x shard the grid across its two TensorCores)
            dimension_semantics=("parallel", "parallel"),
            vmem_limit_bytes=48 * 1024 * 1024,
        ),
    )(gt3, ctx3, emb_t)

    sample = sample_flat.reshape(B, E + Cc, H, W)

    # ignore mask + valid-pixel count: trivially cheap elementwise + reduce,
    # handled by XLA (keeps the kernel outputs lane-dense and the grid parallel).
    ignore_mask = gt != ignore_index
    valid_count = jnp.sum(ignore_mask.astype(jnp.int32))
    return sample, ignore_mask, valid_count


if __name__ == "__main__":
    # Small, deterministic configuration consistent with the module.
    B, H, W = 2, 16, 16          # target / contextual spatial resolution
    C_CLS, E = 16, 32            # visible classes, embedding dim
    CC = 32                      # contextual feature channels
    IGNORE_INDEX = 255

    key = jax.random.PRNGKey(0)
    k_emb, k_ctx, k_gt, k_ign = jax.random.split(key, 4)

    emb_vis = jax.random.normal(k_emb, (C_CLS, E), dtype=jnp.float32)
    contextual = jax.random.normal(k_ctx, (B, CC, H, W), dtype=jnp.float32)
    gt = jax.random.randint(k_gt, (B, H, W), 0, C_CLS, dtype=jnp.int32)
    # sprinkle some ignore_index pixels like real segmentation labels
    ign = jax.random.bernoulli(k_ign, 0.1, (B, H, W))
    gt = jnp.where(ign, jnp.int32(IGNORE_INDEX), gt)

    sample, ignore_mask, valid_count = ours_sample(
        gt, emb_vis, contextual, ignore_index=IGNORE_INDEX)
    jax.block_until_ready((sample, ignore_mask, valid_count))

    # Pure-JAX reference (one_hot -> zero rows for ignore_index, matching the kernel).
    cond_ref = jnp.einsum("bhwc,ce->bhwe", jax.nn.one_hot(gt, C_CLS), emb_vis)
    sample_want = jnp.concatenate(
        [jnp.transpose(cond_ref, (0, 3, 1, 2)), contextual], axis=1)
    mask_want = gt != IGNORE_INDEX

    np.testing.assert_allclose(np.asarray(sample), np.asarray(sample_want),
                               rtol=1e-5, atol=1e-5)
    np.testing.assert_array_equal(np.asarray(ignore_mask), np.asarray(mask_want))
    assert int(valid_count) == int(mask_want.sum())
    assert int(valid_count) > 0  # the MeaninglessError check in forward()

    print("KERNEL_OK")
</pallas_src>

<mosaic_0001>
module attributes {stable_mosaic.version = 11 : i64} {
  func.func @embed_concat_kernel(%arg0: i32, %arg1: i32, %arg2: memref<1x1x256xi32, #tpu.memory_space<vmem>>, %arg3: memref<1x32x256xf32, #tpu.memory_space<vmem>>, %arg4: memref<32x16xf32, #tpu.memory_space<vmem>>, %arg5: memref<1x64x256xf32, #tpu.memory_space<vmem>>) attributes {dimension_semantics = [#tpu.dimension_semantics<parallel>, #tpu.dimension_semantics<parallel>], iteration_bounds = array<i64: 2, 1>, scalar_prefetch = 0 : i64, scratch_operands = 0 : i64, tpu.core_type = #tpu.core_type<tc>, window_params = [{transform_indices = @transform_0, window_bounds = array<i64: 1, 1, 256>}, {transform_indices = @transform_1, window_bounds = array<i64: 1, 32, 256>}, {pipeline_mode = #tpu.pipeline_mode<synchronous>, transform_indices = @transform_2, window_bounds = array<i64: 32, 16>}, {transform_indices = @transform_3, window_bounds = array<i64: 1, 64, 256>}]} {
    %c0 = arith.constant 0 : index
    %c0_0 = arith.constant 0 : index
    %c0_1 = arith.constant 0 : index
    %0 = vector.load %arg2[%c0, %c0_0, %c0_1] : memref<1x1x256xi32, #tpu.memory_space<vmem>>, vector<1x1x256xi32>
    %1 = vector.shape_cast %0 : vector<1x1x256xi32> to vector<1x256xi32>
    %2 = tpu.iota {dimensions = array<i32: 0>} : vector<16x256xi32>
    %3 = vector.broadcast %1 : vector<1x256xi32> to vector<16x256xi32>
    %4 = arith.cmpi eq, %2, %3 : vector<16x256xi32>
    %5 = arith.extui %4 : vector<16x256xi1> to vector<16x256xi32>
    %6 = arith.sitofp %5 : vector<16x256xi32> to vector<16x256xf32>
    %c0_2 = arith.constant 0 : index
    %c0_3 = arith.constant 0 : index
    %7 = vector.load %arg4[%c0_2, %c0_3] : memref<32x16xf32, #tpu.memory_space<vmem>>, vector<32x16xf32>
    %cst = arith.constant dense<0.000000e+00> : vector<32x256xf32>
    %8 = tpu.matmul %7, %6, %cst {dimension_numbers = #tpu.dot_dimension_numbers<[1], [0], [0], [1], [0, 0, 1, 1], [], []>} : vector<32x16xf32>, vector<16x256xf32>, vector<32x256xf32> -> vector<32x256xf32>
    %c0_4 = arith.constant 0 : index
    %c0_5 = arith.constant 0 : index
    %c0_6 = arith.constant 0 : index
    %9 = vector.load %arg5[%c0_4, %c0_5, %c0_6] : memref<1x64x256xf32, #tpu.memory_space<vmem>>, vector<1x32x256xf32>
    %10 = vector.shape_cast %9 : vector<1x32x256xf32> to vector<32x256xf32>
    %11 = vector.shape_cast %8 : vector<32x256xf32> to vector<1x32x256xf32>
    tpu.vector_store %arg5[%c0_4, %c0_5, %c0_6], %11 {strides = array<i32>} : memref<1x64x256xf32, #tpu.memory_space<vmem>>, vector<1x32x256xf32>,
    %c0_7 = arith.constant 0 : index
    %c0_8 = arith.constant 0 : index
    %c0_9 = arith.constant 0 : index
    %12 = vector.load %arg3[%c0_7, %c0_8, %c0_9] : memref<1x32x256xf32, #tpu.memory_space<vmem>>, vector<1x32x256xf32>
    %13 = vector.shape_cast %12 : vector<1x32x256xf32> to vector<32x256xf32>
    %c0_10 = arith.constant 0 : index
    %c32 = arith.constant 32 : index
    %c0_11 = arith.constant 0 : index
    %14 = vector.load %arg5[%c0_10, %c32, %c0_11] : memref<1x64x256xf32, #tpu.memory_space<vmem>>, vector<1x32x256xf32>
    %15 = vector.shape_cast %14 : vector<1x32x256xf32> to vector<32x256xf32>
    %16 = vector.shape_cast %13 : vector<32x256xf32> to vector<1x32x256xf32>
    tpu.vector_store %arg5[%c0_10, %c32, %c0_11], %16 {strides = array<i32>} : memref<1x64x256xf32, #tpu.memory_space<vmem>>, vector<1x32x256xf32>,
    return
  }
  func.func @transform_0(%arg0: i32, %arg1: i32) -> (i32, i32, i32) {
    %c0_i32 = arith.constant 0 : i32
    %c0_i32_0 = arith.constant 0 : i32
    return %arg0, %c0_i32, %arg1 : i32, i32, i32
  }
  func.func @transform_1(%arg0: i32, %arg1: i32) -> (i32, i32, i32) {
    %c0_i32 = arith.constant 0 : i32
    %c0_i32_0 = arith.constant 0 : i32
    return %arg0, %c0_i32, %arg1 : i32, i32, i32
  }
  func.func @transform_2(%arg0: i32, %arg1: i32) -> (i32, i32) {
    %c0_i32 = arith.constant 0 : i32
    %c0_i32_0 = arith.constant 0 : i32
    %c0_i32_1 = arith.constant 0 : i32
    return %c0_i32, %c0_i32_0 : i32, i32
  }
  func.func @transform_3(%arg0: i32, %arg1: i32) -> (i32, i32, i32) {
    %c0_i32 = arith.constant 0 : i32
    %c0_i32_0 = arith.constant 0 : i32
    return %arg0, %c0_i32, %arg1 : i32, i32, i32
  }
}

</mosaic_0001>

<llo_original>
// kernel: tpu_custom_call.1
$region0: #{tpu_custom_call.1}
  #allocation0 [shape = 'u32[]', space=smem, size = 0x4, offset = 0x4, fixed_abs, tag = 'smem constant byte address 0x4 - core index']
  #allocation1 [shape = 'u32[144,128]{1,0:T(1,128)}', space=vmem, size = 0x12000, scoped, tag = 'internal scratch']
  %s0 = inlined_call_operand.vmem [shape: s32[2,1,256], index: 0, kind: input, shape index: {}]
  %s1 = inlined_call_operand.hbm [shape: f32[2,32,256], index: 1, kind: input, shape index: {}]
  %s2 = inlined_call_operand.vmem [shape: f32[32,16], index: 2, kind: input, shape index: {}]
  %s3 = inlined_call_operand.hbm [shape: f32[2,64,256], index: 3, kind: output, shape index: {}]
  %s4 = sld [smem:[#allocation0]]
  $region49: #{tpu_custom_call.1} parent=0
    _
  %s6 = ssub.s32 1, %s4
  %s7 = scalar_select 0, %s6, %s4
  $region1: #{tpu_custom_call.1} parent=0
    #allocation2 [shape = 'u8[65536]{0}', space=vmem, size = 0x10000, scoped, tag = 'input window, operand 1']
    #allocation3 [shape = 's32[2]{0}', space=sflag, size = 0x8, scoped, tag = 'scoped memory for tpu_custom_call.1']
    #allocation4 [shape = 's32[2]{0}', space=sflag, size = 0x8, scoped, tag = 'scoped memory for tpu_custom_call.1']
    #allocation5 [shape = 'u8[131072]{0}', space=vmem, size = 0x20000, scoped, tag = 'output window, operand 0']
    %8 = vsyncpa [#allocation3], 0
    %s9 = scalar_lea.sflag [#allocation3], 1
    %10 = vsyncpa %s9, 0
    %11 = vsyncpa [#allocation4], 0
    %s12 = scalar_lea.sflag [#allocation4], 1
    %13 = vsyncpa %s12, 0
    loop: start=0, step=1, limit=4
    $region2: #{tpu_custom_call.1} parent=1 // loop_pre_header
      _
    $region3: #{tpu_custom_call.1} parent=1 // loop_header
      %s15 = sphi 0, %s19
      %p16 = scmp.ge.s32.totalorder %s15, 4
      %s22 = sphi 0, %s34
      %s23 = sphi 0, %s30
      %s24 = sphi 0, %s22
      %s25 = sphi 0, %s23
      %s26 = sphi 0, %s24
      %s27 = sphi 0, %s25
      %s39 = sphi 0, %s41
      %s42 = sphi 0, %s39
      %s43 = sphi 0, %s42
      %s59 = sphi 0, %s43
      %s67 = sphi 0, %s69
      %s70 = sphi 0, %s67
      %s71 = sphi 0, %s70
      %s87 = sphi 0, %s71
      %s91 = sphi 0, %s91
      %s93 = sphi 0, %s91
      %s94 = sphi 0, %s93
      %s108 = sphi 0, %s94
      %s116 = sphi 0, %s118
      %s119 = sphi 0, %s116
      %s120 = sphi 0, %s119
      %s136 = sphi 0, %s120
    $region4: #{tpu_custom_call.1} parent=1 // loop_header_branch
      %18 = sbr.rel (%p16) target = $region8
    $region5: #{tpu_custom_call.1} parent=1 // loop_body
      %s20 = ssub.s32 %s15, 1
      %s21 = ssub.s32 %s15, 2
      %s28 = sadd.s32 1, %s23
      %p29 = scmp.ge.s32.totalorder %s28, 1
      %s30 = scalar_select %p29, 0, %s28
      %s31 = sadd.s32 1, %s22
      %s32 = scalar_select %p29, %s31, %s22
      %p33 = scmp.ge.s32.totalorder %s32, 2
      %s34 = scalar_select %p33, 0, %s32
      %s35 = ssub.s32 %s22, %s34
      %s36 = ssub.s32 %s23, %s30
      %s37 = sor.u32 %s35, %s36
      %p38 = scmp.eq.s32.totalorder %s37, 0
      %s40 = sadd.s32 %s39, 1
      %s41 = scalar_select %p38, %s39, %s40
      %p44 = pneg %p38
      %p45 = scmp.eq.s32.totalorder %s15, 1
      %p46 = por %p44, %p45
      %p47 = scmp.ne.s32.totalorder %s39, %s42
      %p48 = scmp.eq.s32.totalorder %s15, 0
      %p49 = por %p47, %p48
      %p50 = scmp.ne.s32.totalorder %s39, %s42
      %p51 = scmp.eq.s32.totalorder %s20, 1
      %p52 = por %p50, %p51
      %p53 = scmp.ne.s32.totalorder %s42, %s43
      %p54 = scmp.eq.s32.totalorder %s20, 0
      %p55 = por %p53, %p54
      %p56 = scmp.ne.s32.totalorder %s42, %s43
      %p57 = scmp.eq.s32.totalorder %s21, 1
      %p58 = por %p56, %p57
      %p60 = scmp.ne.s32.totalorder %s43, %s59
      %p61 = scmp.eq.s32.totalorder %s21, 0
      %p62 = por %p60, %p61
      %s63 = ssub.s32 %s22, %s34
      %s64 = ssub.s32 %s23, %s30
      %s65 = sor.u32 %s63, %s64
      %p66 = scmp.eq.s32.totalorder %s65, 0
      %s68 = sadd.s32 %s67, 1
      %s69 = scalar_select %p66, %s67, %s68
      %p72 = pneg %p66
      %p73 = scmp.eq.s32.totalorder %s15, 1
      %p74 = por %p72, %p73
      %p75 = scmp.ne.s32.totalorder %s67, %s70
      %p76 = scmp.eq.s32.totalorder %s15, 0
      %p77 = por %p75, %p76
      %p78 = scmp.ne.s32.totalorder %s67, %s70
      %p79 = scmp.eq.s32.totalorder %s20, 1
      %p80 = por %p78, %p79
      %p81 = scmp.ne.s32.totalorder %s70, %s71
      %p82 = scmp.eq.s32.totalorder %s20, 0
      %p83 = por %p81, %p82
      %p84 = scmp.ne.s32.totalorder %s70, %s71
      %p85 = scmp.eq.s32.totalorder %s21, 1
      %p86 = por %p84, %p85
      %p88 = scmp.ne.s32.totalorder %s71, %s87
      %p89 = scmp.eq.s32.totalorder %s21, 0
      %p90 = por %p88, %p89
      %s92 = sadd.s32 %s91, 1
      %p95 = scmp.eq.s32.totalorder %s15, 1
      %p96 = scmp.ne.s32.totalorder %s91, %s93
      %p97 = scmp.eq.s32.totalorder %s15, 0
      %p98 = por %p96, %p97
      %p99 = scmp.ne.s32.totalorder %s91, %s93
      %p100 = scmp.eq.s32.totalorder %s20, 1
      %p101 = por %p99, %p100
      %p102 = scmp.ne.s32.totalorder %s93, %s94
      %p103 = scmp.eq.s32.totalorder %s20, 0
      %p104 = por %p102, %p103
      %p105 = scmp.ne.s32.totalorder %s93, %s94
      %p106 = scmp.eq.s32.totalorder %s21, 1
      %p107 = por %p105, %p106
      %p109 = scmp.ne.s32.totalorder %s94, %s108
      %p110 = scmp.eq.s32.totalorder %s21, 0
      %p111 = por %p109, %p110
      %s112 = ssub.s32 %s22, %s34
      %s113 = ssub.s32 %s23, %s30
      %s114 = sor.u32 %s112, %s113
      %p115 = scmp.eq.s32.totalorder %s114, 0
      %s117 = sadd.s32 %s116, 1
      %s118 = scalar_select %p115, %s116, %s117
      %p121 = pneg %p115
      %p122 = scmp.eq.s32.totalorder %s15, 1
      %p123 = por %p121, %p122
      %p124 = scmp.ne.s32.totalorder %s116, %s119
      %p125 = scmp.eq.s32.totalorder %s15, 0
      %p126 = por %p124, %p125
      %p127 = scmp.ne.s32.totalorder %s116, %s119
      %p128 = scmp.eq.s32.totalorder %s20, 1
      %p129 = por %p127, %p128
      %p130 = scmp.ne.s32.totalorder %s119, %s120
      %p131 = scmp.eq.s32.totalorder %s20, 0
      %p132 = por %p130, %p131
      %p133 = scmp.ne.s32.totalorder %s119, %s120
      %p134 = scmp.eq.s32.totalorder %s21, 1
      %p135 = por %p133, %p134
      %p137 = scmp.ne.s32.totalorder %s120, %s136
      %p138 = scmp.eq.s32.totalorder %s21, 0
      %p139 = por %p137, %p138
      %p140 = scmp.le.s32.totalorder 1, %s15
      %p141 = scmp.lt.s32.totalorder %s15, 3
      %p142 = pnand %p140, %p141
      %p143 = pneg %p142
      // Predicated region
      $region9: #{tpu_custom_call.1} parent=5 // pred_check
        _
      $region10: #{tpu_custom_call.1} parent=5 // pred_check_branch
        %145 = sbr.rel (%p142) target = $region12
      $region11: #{tpu_custom_call.1} parent=5 // pred_region
        %s146 = ssub.s32 %s15, 1
        // Predicated region
        $region13: #{tpu_custom_call.1} parent=11 // pred_check
          %p147 = pneg %p104
        $region14: #{tpu_custom_call.1} parent=11 // pred_check_branch
          %149 = sbr.rel (%p147) target = $region16
        $region15: #{tpu_custom_call.1} parent=11 // pred_region
          _
        $region16: #{tpu_custom_call.1} parent=11 // pred_fallthru
          _
      $region12: #{tpu_custom_call.1} parent=5 // pred_fallthru
        _
      %p150 = scmp.lt.s32.totalorder %s15, 2
      // Predicated region
      $region17: #{tpu_custom_call.1} parent=5 // pred_check
        %p151 = pneg %p150
      $region18: #{tpu_custom_call.1} parent=5 // pred_check_branch
        %153 = sbr.rel (%p151) target = $region20
      $region19: #{tpu_custom_call.1} parent=5 // pred_region
        // Predicated region
        $region21: #{tpu_custom_call.1} parent=19 // pred_check
          %p154 = pneg %p49
        $region22: #{tpu_custom_call.1} parent=19 // pred_check_branch
          %156 = sbr.rel (%p154) target = $region24
        $region23: #{tpu_custom_call.1} parent=19 // pred_region
          %s157 = smul.u32 2, %s23
          %p158 = scmp.lt.s32.totalorder %s22, 1
          %s159 = scalar_select %p158, %s22, 1
          %p160 = scmp.lt.s32.totalorder %s157, 1
          %s161 = scalar_select %p160, %s157, 1
          %s162 = smul.addr %s159, 2
          %s163 = sadd.s32 %s161, %s162
          %s164 = scalar_lea.vmem %s0, %s163
          %s165 = smul.u32 2, %s23
        $region24: #{tpu_custom_call.1} parent=19 // pred_fallthru
          _
        // Predicated region
        $region25: #{tpu_custom_call.1} parent=19 // pred_check
          %p166 = pneg %p77
        $region26: #{tpu_custom_call.1} parent=19 // pred_check_branch
          %168 = sbr.rel (%p166) target = $region28
        $region27: #{tpu_custom_call.1} parent=19 // pred_region
          %s169 = sand.u32 %s67, 1
          %s170 = scalar_lea.sflag [#allocation3], %s169
          %s171 = sand.u32 %s67, 1
          %s172 = smul.addr %s171, 64
          %s173 = scalar_lea.vmem [#allocation2], %s172
          %s174 = smul.u32 2, %s23
          %s176 = ssub.s32 1024, 1024
          %177 = vsyncadd %s170, %s176
          %s178 = smul.addr %s22, 8
          %s179 = sadd.s32 %s174, %s178
          %s180 = smul.addr %s179, 128
          %s181 = scalar_lea.hbm %s1, %s180
          %s182 = sshll.u32 %s173, 4
          %s183 = int_to_ptr.vmem [resolvable:$true] %s182
          %188 = dma.hbm_to_vmem [thread:$0]  %s181, 1024, %s183, %s170, 256, 256, 16
        $region28: #{tpu_custom_call.1} parent=19 // pred_fallthru
          _
      $region20: #{tpu_custom_call.1} parent=5 // pred_fallthru
        _
      %p189 = scmp.le.s32.totalorder 1, %s15
      %p190 = scmp.lt.s32.totalorder %s15, 3
      %p191 = pnand %p189, %p190
      %p192 = pneg %p191
      // Predicated region
      $region29: #{tpu_custom_call.1} parent=5 // pred_check
        _
      $region30: #{tpu_custom_call.1} parent=5 // pred_check_branch
        %194 = sbr.rel (%p191) target = $region32
      $region31: #{tpu_custom_call.1} parent=5 // pred_region
        %s195 = ssub.s32 %s15, 1
        %s196 = sand.u32 %s70, 1
        %s197 = scalar_lea.sflag [#allocation3], %s196
        %s198 = sand.u32 %s70, 1
        %s199 = smul.addr %s198, 64
        %s200 = scalar_lea.vmem [#allocation2], %s199
        // Predicated region
        $region33: #{tpu_custom_call.1} parent=31 // pred_check
          %p201 = pneg %p83
        $region34: #{tpu_custom_call.1} parent=31 // pred_check_branch
          %203 = sbr.rel (%p201) target = $region36
        $region35: #{tpu_custom_call.1} parent=31 // pred_region
          %204 = dma.done %s197, 1024
        $region36: #{tpu_custom_call.1} parent=31 // pred_fallthru
          _
        %s205 = smul.u32 2, %s25
        %p206 = scmp.lt.s32.totalorder %s24, 1
        %s207 = scalar_select %p206, %s24, 1
        %p208 = scmp.lt.s32.totalorder %s205, 1
        %s209 = scalar_select %p208, %s205, 1
        %s210 = smul.addr %s207, 2
        %s211 = sadd.s32 %s209, %s210
        %s212 = scalar_lea.vmem %s0, %s211
        %p213 = pneg %p55
        %p214 = pneg %p52
        %s215 = sand.u32 %s70, 1
        %s216 = scalar_lea.sflag [#allocation3], %s215
        %s217 = sand.u32 %s70, 1
        %s218 = smul.addr %s217, 64
        %s219 = scalar_lea.vmem [#allocation2], %s218
        %p220 = pneg %p83
        %p221 = pneg %p80
        %p222 = pneg %p104
        %p223 = pneg %p101
        %p224 = pneg %p132
        %p225 = pneg %p129
        %s226 = sand.u32 %s119, 1
        %s227 = scalar_lea.sflag [#allocation4], %s226
        %s228 = sand.u32 %s119, 1
        %s229 = smul.addr %s228, 128
        %s230 = scalar_lea.vmem [#allocation5], %s229
        %s231 = smul.u32 2, %s25
        %p232 = scmp.lt.s32.totalorder %s24, 1
        %s233 = scalar_select %p232, %s24, 1
        %p234 = scmp.lt.s32.totalorder %s231, 1
        %s235 = scalar_select %p234, %s231, 1
        %s236 = smul.addr %s233, 2
        %s237 = sadd.s32 %s235, %s236
        %s238 = scalar_lea.vmem %s0, %s237
        %s239 = smul.u32 2, %s25
        %s240 = smul.u32 2, %s25
        %s241 = smul.u32 2, %s25
        %v242 = vld [vmem:[%s238] sm:$0x3]
        %v243 = vlaneseq
        %v244 = vshrl.u32 %v243, 7
        %v245 = vadd.s32 %v244, 8
        %v246 = vlaneseq
        %v247 = vshrl.u32 %v246, 7
        %v248 = vsub.s32 0, %v247
        %v249 = vrot.slane %v242, %v248
        %v250 = vlaneseq
        %v251 = vshrl.u32 %v250, 7
        %v252 = vsub.s32 1, %v251
        %v253 = vrot.slane %v242, %v252
        %vm254 = vcmp.eq.s32.totalorder %v244, %v249
        %vm255 = vcmp.eq.s32.totalorder %v244, %v253
        %vm256 = vcmp.eq.s32.totalorder %v245, %v249
        %vm257 = vcmp.eq.s32.totalorder %v245, %v253
        %v258 = vsel %vm254, 1, 0
        %v259 = vsel %vm255, 1, 0
        %v260 = vsel %vm256, 1, 0
        %v261 = vsel %vm257, 1, 0
        %v262 = vcvt.s32.f32 %v258
        %v263 = vcvt.s32.f32 %v259
        %v264 = vcvt.s32.f32 %v260
        %v265 = vcvt.s32.f32 %v261
        %v266 = vld [vmem:[%s2] sm:$0xff]
        %v267 = vld [vmem:[%s2 + $0x8] sm:$0xff]
        %v268 = vld [vmem:[%s2 + $0x10] sm:$0xff]
        %v269 = vld [vmem:[%s2 + $0x18] sm:$0xff]
        %vm270 = vcmask 130048
        %v272 = vsel %vm270, %v266, 0
        %v275 = vsel %vm270, %v267, 0
        %v278 = vsel %vm270, %v268, 0
        %v281 = vsel %vm270, %v269, 0
        %283 = vmatprep.subr.mxu0 %v263
        %284 = vmatpush1.msra.mxu0 %v262
        %285 = vmatprep.subr.mxu0 %v265
        %286 = vmatpush1.msra.mxu0 %v264
        %287 = vmatprep.subr.mxu0 0.0
        %288 = vmatpush1.msra.mxu0 0.0
        %289 = vmatprep.subr.mxu0 0.0
        %290 = vmatpush1.msra.mxu0 0.0
        %291 = vmatprep.subr.mxu0 0.0
        %292 = vmatpush1.msra.mxu0 0.0
        %293 = vmatprep.subr.mxu0 0.0
        %294 = vmatpush1.msra.mxu0 0.0
        %295 = vmatprep.subr.mxu0 0.0
        %296 = vmatpush1.msra.mxu0 0.0
        %297 = vmatprep.subr.mxu0 0.0
        %298 = vmatpush1.msra.mxu0 0.0
        %299 = vmatprep.subr.mxu0 0.0
        %300 = vmatpush1.msra.mxu0 0.0
        %301 = vmatprep.subr.mxu0 0.0
        %302 = vmatpush1.msra.mxu0 0.0
        %303 = vmatprep.subr.mxu0 0.0
        %304 = vmatpush1.msra.mxu0 0.0
        %305 = vmatprep.subr.mxu0 0.0
        %306 = vmatpush1.msra.mxu0 0.0
        %307 = vmatprep.subr.mxu0 0.0
        %308 = vmatpush1.msra.mxu0 0.0
        %309 = vmatprep.subr.mxu0 0.0
        %310 = vmatpush1.msra.mxu0 0.0
        %311 = vmatprep.subr.mxu0 0.0
        %312 = vmatpush1.msra.mxu0 0.0
        %313 = vmatprep.subr.mxu0 0.0
        %314 = vmatpush1.msra.mxu0 0.0
        %315 = vmatprep.subr.mxu0 0.0
        %316 = vmatpush1.msra.mxu0 0.0
        %317 = vmatprep.subr.mxu0 0.0
        %318 = vmatpush1.msra.mxu0 0.0
        %319 = vmatprep.subr.mxu0 0.0
        %320 = vmatpush1.msra.mxu0 0.0
        %321 = vmatprep.subr.mxu0 0.0
        %322 = vmatpush1.msra.mxu0 0.0
        %323 = vmatprep.subr.mxu0 0.0
        %324 = vmatpush1.msra.mxu0 0.0
        %325 = vmatprep.subr.mxu0 0.0
        %326 = vmatpush1.msra.mxu0 0.0
        %327 = vmatprep.subr.mxu0 0.0
        %328 = vmatpush1.msra.mxu0 0.0
        %329 = vmatprep.subr.mxu0 0.0
        %330 = vmatpush1.msra.mxu0 0.0
        %331 = vmatprep.subr.mxu0 0.0
        %332 = vmatpush1.msra.mxu0 0.0
        %333 = vmatprep.subr.mxu0 0.0
        %334 = vmatpush1.msra.mxu0 0.0
        %335 = vmatprep.subr.mxu0 0.0
        %336 = vmatpush1.msra.mxu0 0.0
        %337 = vmatprep.subr.mxu0 0.0
        %338 = vmatpush1.msra.mxu0 0.0
        %339 = vmatprep.subr.mxu0 0.0
        %340 = vmatpush1.msra.mxu0 0.0
        %341 = vmatprep.subr.mxu0 0.0
        %342 = vmatpush1.msra.mxu0 0.0
        %343 = vmatprep.subr.mxu0 0.0
        %344 = vmatpush1.msra.mxu0 0.0
        %345 = vmatprep.subr.mxu0 0.0
        %346 = vmatpush1.msra.mxu0 0.0
        %347 = vmatprep.mubr.f32.mxu0 0.0
        %348 = vmatmul.mubr.f32.gmra.mrb[0].mxu0 %v272
        %v349 = vpop.f32.mrb[0].mxu0
        %v350 = vadd.f32 0.0, %v349
        %v351 = vpop.f32.mrb[0].mxu0
        %v352 = vadd.f32 0.0, %v351
        %353 = vmatprep.mubr.f32.mxu0 0.0
        %354 = vmatmul.mubr.f32.gmra.mrb[0].mxu0 %v275
        %v355 = vpop.f32.mrb[0].mxu0
        %v356 = vadd.f32 0.0, %v355
        %v357 = vpop.f32.mrb[0].mxu0
        %v358 = vadd.f32 0.0, %v357
        %359 = vmatprep.mubr.f32.mxu0 0.0
        %360 = vmatmul.mubr.f32.gmra.mrb[0].mxu0 %v278
        %v361 = vpop.f32.mrb[0].mxu0
        %v362 = vadd.f32 0.0, %v361
        %v363 = vpop.f32.mrb[0].mxu0
        %v364 = vadd.f32 0.0, %v363
        %365 = vmatprep.mubr.f32.mxu0 0.0
        %366 = vmatmul.mubr.f32.gmra.mrb[0].mxu0 %v281
        %v367 = vpop.f32.mrb[0].mxu0
        %v368 = vadd.f32 0.0, %v367
        %v369 = vpop.f32.mrb[0].mxu0
        %v370 = vadd.f32 0.0, %v369
        %371 = vdwg.mxu0
        %372 = vst [vmem:[%s230] sm:$0xff] %v350
        %373 = vst [vmem:[%s230 + $0x8] sm:$0xff] %v352
        %374 = vst [vmem:[%s230 + $0x10] sm:$0xff] %v356
        %375 = vst [vmem:[%s230 + $0x18] sm:$0xff] %v358
        %376 = vst [vmem:[%s230 + $0x20] sm:$0xff] %v362
        %377 = vst [vmem:[%s230 + $0x28] sm:$0xff] %v364
        %378 = vst [vmem:[%s230 + $0x30] sm:$0xff] %v368
        %379 = vst [vmem:[%s230 + $0x38] sm:$0xff] %v370
        %v380 = vld [vmem:[%s200] sm:$0xff]
        %v381 = vld [vmem:[%s200 + $0x8] sm:$0xff]
        %v382 = vld [vmem:[%s200 + $0x10] sm:$0xff]
        %v383 = vld [vmem:[%s200 + $0x18] sm:$0xff]
        %v384 = vld [vmem:[%s200 + $0x20] sm:$0xff]
        %v385 = vld [vmem:[%s200 + $0x28] sm:$0xff]
        %v386 = vld [vmem:[%s200 + $0x30] sm:$0xff]
        %v387 = vld [vmem:[%s200 + $0x38] sm:$0xff]
        %388 = vst [vmem:[%s230 + $0x40] sm:$0xff] %v380
        %389 = vst [vmem:[%s230 + $0x48] sm:$0xff] %v381
        %390 = vst [vmem:[%s230 + $0x50] sm:$0xff] %v382
        %391 = vst [vmem:[%s230 + $0x58] sm:$0xff] %v383
        %392 = vst [vmem:[%s230 + $0x60] sm:$0xff] %v384
        %393 = vst [vmem:[%s230 + $0x68] sm:$0xff] %v385
        %394 = vst [vmem:[%s230 + $0x70] sm:$0xff] %v386
        %395 = vst [vmem:[%s230 + $0x78] sm:$0xff] %v387
        %s396 = sand.u32 %s119, 1
        %s397 = scalar_lea.sflag [#allocation4], %s396
        %s398 = sand.u32 %s119, 1
        %s399 = smul.addr %s398, 128
        %s400 = scalar_lea.vmem [#allocation5], %s399
        // Predicated region
        $region37: #{tpu_custom_call.1} parent=31 // pred_check
          %p401 = pneg %p129
        $region38: #{tpu_custom_call.1} parent=31 // pred_check_branch
          %403 = sbr.rel (%p401) target = $region40
        $region39: #{tpu_custom_call.1} parent=31 // pred_region
          %s404 = smul.u32 2, %s25
          %s406 = ssub.s32 2048, 2048
          %407 = vsyncadd %s397, %s406
          %s408 = smul.addr %s24, 16
          %s409 = sadd.s32 %s404, %s408
          %s410 = smul.addr %s409, 128
          %s411 = scalar_lea.hbm %s3, %s410
          %s412 = sshll.u32 %s400, 4
          %s413 = int_to_ptr.vmem [resolvable:$true] %s412
          %418 = dma.vmem_to_hbm [thread:$0]  %s413, 2048, %s411, %s397, 256, 256, 16
        $region40: #{tpu_custom_call.1} parent=31 // pred_fallthru
          _
      $region32: #{tpu_custom_call.1} parent=5 // pred_fallthru
        _
      %p419 = scmp.le.s32.totalorder 2, %s15
      // Predicated region
      $region41: #{tpu_custom_call.1} parent=5 // pred_check
        %p420 = pneg %p419
      $region42: #{tpu_custom_call.1} parent=5 // pred_check_branch
        %422 = sbr.rel (%p420) target = $region44
      $region43: #{tpu_custom_call.1} parent=5 // pred_region
        %s423 = ssub.s32 %s15, 2
        // Predicated region
        $region45: #{tpu_custom_call.1} parent=43 // pred_check
          %p424 = pneg %p135
        $region46: #{tpu_custom_call.1} parent=43 // pred_check_branch
          %426 = sbr.rel (%p424) target = $region48
        $region47: #{tpu_custom_call.1} parent=43 // pred_region
          %s427 = sand.u32 %s120, 1
          %s428 = scalar_lea.sflag [#allocation4], %s427
          %s429 = sand.u32 %s120, 1
          %s430 = smul.addr %s429, 128
          %s431 = scalar_lea.vmem [#allocation5], %s430
          %432 = dma.done %s428, 2048
        $region48: #{tpu_custom_call.1} parent=43 // pred_fallthru
          _
      $region44: #{tpu_custom_call.1} parent=5 // pred_fallthru
        _
    $region6: #{tpu_custom_call.1} parent=1 // loop_footer
      %s19 = sadd.s32 1, %s15
    $region7: #{tpu_custom_call.1} parent=1 // loop_footer_branch
      %14 = sbr.rel target = $region3
    $region8: #{tpu_custom_call.1} parent=1 // loop_exit
      _
    %433 = vsyncpa [#allocation3], 1
    %s434 = scalar_lea.sflag [#allocation3], 1
    %435 = vsyncpa %s434, 1
    %436 = vsyncpa [#allocation4], 1
    %s437 = scalar_lea.sflag [#allocation4], 1
    %438 = vsyncpa %s437, 1

</llo_original>
